<compile_context>
chip_gen: v6e
topology: v6e:2x2x1
jax: 0.10.0
libtpu: 0.0.40
codegen_flags: <defaults>
</compile_context>

<pallas_src>
import functools

import jax
import jax.numpy as jnp
from jax import lax
from jax.experimental import pallas as pl
from jax.experimental.pallas import tpu as pltpu


def _round_up(x, m):
    return ((x + m - 1) // m) * m


def _attention_kernel(q_ref, k_ref, o_ref, *, chunk):
    """One batch tile. Processes `chunk` rows at a time to bound vreg pressure."""
    tb = k_ref.shape[0]
    nfull = tb // chunk
    tail = tb - nfull * chunk

    def process(r0, rows):
        q = q_ref[pl.ds(r0, rows), :]          # (R, F)      storage dtype
        k = k_ref[pl.ds(r0, rows), :, :]       # (R, S, F)   storage dtype

        # scores[b, s] = sum_f k[b, s, f] * q[b, f]
        # VPU multiply in the storage dtype, f32 accumulation (lane reduce).
        scores = jnp.sum(k * q[:, None, :], axis=-1, dtype=jnp.float32)  # (R, S)

        # Numerically stable softmax over the step axis; exact normalization
        # (divide is tiny and fully hidden under the HBM DMA).
        m = jnp.max(scores, axis=-1, keepdims=True)                      # (R, 1)
        e = jnp.exp(scores - m)                                          # (R, S) EUP
        att = e * (1.0 / jnp.sum(e, axis=-1, keepdims=True))             # (R, S)

        # out[b, f] = sum_s att[b, s] * k[b, s, f]   (sublane reduce, f32 acc)
        out = jnp.sum(k * att[:, :, None], axis=1, dtype=jnp.float32)    # (R, F)
        o_ref[pl.ds(r0, rows), :] = out.astype(o_ref.dtype)

    def body(c, carry):
        process(pl.multiple_of(c * chunk, chunk), chunk)
        return carry

    lax.fori_loop(0, nfull, body, 0, unroll=(nfull <= 8))
    if tail:
        process(nfull * chunk, tail)  # static start/size, multiple of 8 rows


def attention_pallas(q, k):
    """q: (B, F), k: (B, S, F) -> (B, F). Matches the PyTorch Attention.forward."""
    B, F = q.shape
    Bk, S, Fk = k.shape
    assert Bk == B and Fk == F, "q/k shape mismatch"

    itemsize = jnp.dtype(k.dtype).itemsize
    sublane = {4: 8, 2: 16, 1: 32}.get(itemsize, 8)
    # VMEM footprint of one k row after (sublane, 128)-lane tiling.
    padded_row_bytes = _round_up(S, sublane) * _round_up(F, 128) * itemsize

    # Generation-aware budgets: v7x has 64 MiB VMEM (vs 128 MiB on v5e/v6e).
    kind = ""
    try:
        kind = jax.devices()[0].device_kind.lower()
    except Exception:
        pass
    is_v7 = "v7" in kind
    k_buf_budget = (8 << 20) if is_v7 else (16 << 20)   # padded bytes / k buffer
    vmem_limit = (48 << 20) if is_v7 else (80 << 20)

    if 2 * 8 * padded_row_bytes > vmem_limit // 2:
        # TODO(synk): add a step-axis grid dimension with online-softmax
        # accumulators (m, l, acc scratch) for very large step*feature rows.
        raise ValueError("step*feature row too large for a single VMEM block")

    # Rows per grid step: as many as fit the padded per-buffer budget (Pallas
    # double-buffers inputs), but keep >= ~4 grid steps when the batch allows
    # so the pipeline always has a tile to prefetch; pad the batch only to a
    # multiple of 8 rows per step (bounded waste even at multi-MiB tiles).
    B8 = _round_up(B, 8)
    rows_budget = max(8, (k_buf_budget // padded_row_bytes) // 8 * 8)
    n_steps = -(-B8 // rows_budget)                 # VMEM-limited minimum
    n_steps = max(n_steps, min(4, max(1, B8 // 8)))  # keep the pipeline fed
    if is_v7 and n_steps > 1:
        n_steps += n_steps % 2                       # even split over 2 TCs
    tb = _round_up(-(-B8 // n_steps), 8)             # rows per grid step
    B_pad = tb * n_steps
    chunk = min(128, tb)                             # in-kernel row chunk

    if B_pad != B:
        # Zero rows: uniform softmax over zero k rows -> zero output, no NaNs.
        q = jnp.pad(q, ((0, B_pad - B), (0, 0)))
        k = jnp.pad(k, ((0, B_pad - B), (0, 0), (0, 0)))

    # v7x: split the batch grid across both TensorCores; single-TC chips use
    # the plain parallel annotation.
    if is_v7 and n_steps >= 2:
        semantics = (pltpu.CORE_PARALLEL,)
    else:
        semantics = (pltpu.PARALLEL,)

    out_itemsize = jnp.dtype(q.dtype).itemsize
    cost = pl.CostEstimate(
        flops=4 * B_pad * S * F,
        transcendentals=B_pad * S,
        bytes_accessed=(B_pad * S * F + B_pad * F) * itemsize + B_pad * F * out_itemsize,
    )

    out = pl.pallas_call(
        functools.partial(_attention_kernel, chunk=chunk),
        out_shape=jax.ShapeDtypeStruct((B_pad, F), q.dtype),
        grid=(n_steps,),
        in_specs=[
            pl.BlockSpec((tb, F), lambda i: (i, 0)),
            pl.BlockSpec((tb, S, F), lambda i: (i, 0, 0)),
        ],
        out_specs=pl.BlockSpec((tb, F), lambda i: (i, 0)),
        compiler_params=pltpu.CompilerParams(
            dimension_semantics=semantics,
            vmem_limit_bytes=vmem_limit,
        ),
        cost_estimate=cost,
    )(q, k)
    return out[:B] if B_pad != B else out


def attention_reference(q, k):
    scores = jnp.einsum("bsf,bf->bs", k, q)
    att = jax.nn.softmax(scores, axis=1)
    return jnp.einsum("bs,bsf->bf", att, k)


if __name__ == "__main__":
    key = jax.random.PRNGKey(0)
    kq, kk = jax.random.split(key)

    batch, step, feature = 2, 8, 32
    q = jax.random.normal(kq, (batch, feature), dtype=jnp.float32)
    k = jax.random.normal(kk, (batch, step, feature), dtype=jnp.float32)

    out = jax.block_until_ready(attention_pallas(q, k))
    ref = attention_reference(q, k)

    assert out.shape == (batch, feature)
    assert jnp.allclose(out, ref, atol=1e-3, rtol=1e-3), "mismatch vs reference"

    print("KERNEL_OK")
</pallas_src>

<mosaic_0001>
module attributes {stable_mosaic.version = 11 : i64} {
  func.func @_attention_kernel(%arg0: i32, %arg1: memref<8x32xf32, #tpu.memory_space<vmem>>, %arg2: memref<8x8x32xf32, #tpu.memory_space<vmem>>, %arg3: memref<8x32xf32, #tpu.memory_space<vmem>>) attributes {dimension_semantics = [#tpu.dimension_semantics<parallel>], iteration_bounds = array<i64: 1>, scalar_prefetch = 0 : i64, scratch_operands = 0 : i64, tpu.core_type = #tpu.core_type<tc>, window_params = [{transform_indices = @transform_0, window_bounds = array<i64: 8, 32>}, {transform_indices = @transform_1, window_bounds = array<i64: 8, 8, 32>}, {transform_indices = @transform_2, window_bounds = array<i64: 8, 32>}]} {
    %c0_i32 = arith.constant 0 : i32
    %c8_i32 = arith.constant 8 : i32
    %0 = arith.muli %c0_i32, %c8_i32 : i32
    %1 = tpu.assume_multiple %0, 8 : i32
    %2 = arith.index_cast %1 : i32 to index
    %c0 = arith.constant 0 : index
    %3 = vector.load %arg1[%2, %c0] : memref<8x32xf32, #tpu.memory_space<vmem>>, vector<8x32xf32>
    %4 = arith.index_cast %1 : i32 to index
    %c0_0 = arith.constant 0 : index
    %c0_1 = arith.constant 0 : index
    %5 = vector.load %arg2[%4, %c0_0, %c0_1] : memref<8x8x32xf32, #tpu.memory_space<vmem>>, vector<8x8x32xf32>
    %6 = vector.shape_cast %3 : vector<8x32xf32> to vector<8x1x32xf32>
    %7 = vector.broadcast %6 : vector<8x1x32xf32> to vector<8x8x32xf32>
    %8 = arith.mulf %5, %7 : vector<8x8x32xf32>
    %cst = arith.constant dense<0.000000e+00> : vector<8x8xf32>
    %9 = vector.multi_reduction <add>, %8, %cst [2] : vector<8x8x32xf32> to vector<8x8xf32>
    %cst_2 = arith.constant dense<0xFF800000> : vector<8xf32>
    %10 = vector.multi_reduction <maximumf>, %9, %cst_2 [1] : vector<8x8xf32> to vector<8xf32>
    %11 = vector.shape_cast %10 : vector<8xf32> to vector<8x1xf32>
    %12 = vector.broadcast %11 : vector<8x1xf32> to vector<8x8xf32>
    %13 = arith.subf %9, %12 : vector<8x8xf32>
    %14 = math.exp %13 : vector<8x8xf32>
    %cst_3 = arith.constant dense<0.000000e+00> : vector<8xf32>
    %15 = vector.multi_reduction <add>, %14, %cst_3 [1] : vector<8x8xf32> to vector<8xf32>
    %16 = vector.shape_cast %15 : vector<8xf32> to vector<8x1xf32>
    %cst_4 = arith.constant 1.000000e+00 : f32
    %17 = vector.broadcast %cst_4 : f32 to vector<8x1xf32>
    %18 = arith.divf %17, %16 : vector<8x1xf32>
    %19 = vector.broadcast %18 : vector<8x1xf32> to vector<8x8xf32>
    %20 = arith.mulf %14, %19 : vector<8x8xf32>
    %21 = vector.shape_cast %20 : vector<8x8xf32> to vector<8x8x1xf32>
    %22 = vector.broadcast %21 : vector<8x8x1xf32> to vector<8x8x32xf32>
    %23 = arith.mulf %5, %22 : vector<8x8x32xf32>
    %cst_5 = arith.constant dense<0.000000e+00> : vector<8x32xf32>
    %24 = vector.multi_reduction <add>, %23, %cst_5 [1] : vector<8x8x32xf32> to vector<8x32xf32>
    %25 = arith.index_cast %1 : i32 to index
    %c0_6 = arith.constant 0 : index
    %26 = vector.load %arg3[%25, %c0_6] : memref<8x32xf32, #tpu.memory_space<vmem>>, vector<8x32xf32>
    tpu.vector_store %arg3[%25, %c0_6], %24 {strides = array<i32>} : memref<8x32xf32, #tpu.memory_space<vmem>>, vector<8x32xf32>,
    %c1_i32 = arith.constant 1 : i32
    return
  }
  func.func @transform_0(%arg0: i32) -> (i32, i32) {
    %c0_i32 = arith.constant 0 : i32
    %c0_i32_0 = arith.constant 0 : i32
    return %arg0, %c0_i32 : i32, i32
  }
  func.func @transform_1(%arg0: i32) -> (i32, i32, i32) {
    %c0_i32 = arith.constant 0 : i32
    %c0_i32_0 = arith.constant 0 : i32
    %c0_i32_1 = arith.constant 0 : i32
    return %arg0, %c0_i32, %c0_i32_0 : i32, i32, i32
  }
  func.func @transform_2(%arg0: i32) -> (i32, i32) {
    %c0_i32 = arith.constant 0 : i32
    %c0_i32_0 = arith.constant 0 : i32
    return %arg0, %c0_i32 : i32, i32
  }
}

</mosaic_0001>

<llo_original>
// kernel: tpu_custom_call.1
$region0: #{tpu_custom_call.1}
  #allocation0 [shape = 'u32[]', space=smem, size = 0x4, offset = 0x4, fixed_abs, tag = 'smem constant byte address 0x4 - core index']
  #allocation1 [shape = 'u32[144,128]{1,0:T(1,128)}', space=vmem, size = 0x12000, scoped, tag = 'internal scratch']
  %s0 = inlined_call_operand.hbm [shape: f32[8,32], index: 0, kind: input, shape index: {}]
  %s1 = inlined_call_operand.hbm [shape: f32[8,8,32], index: 1, kind: input, shape index: {}]
  %s2 = inlined_call_operand.hbm [shape: f32[8,32], index: 2, kind: output, shape index: {}]
  %s3 = sld [smem:[#allocation0]]
  $region26: #{tpu_custom_call.1} parent=0
    _
  %s5 = ssub.s32 1, %s3
  %s6 = scalar_select 0, %s5, %s3
  $region1: #{tpu_custom_call.1} parent=0
    #allocation2 [shape = 'u8[4096]{0}', space=vmem, size = 0x1000, scoped, tag = 'input window, operand 0, single buffered']
    #allocation3 [shape = 's32[1]{0}', space=sflag, size = 0x4, scoped, tag = 'scoped memory for tpu_custom_call.1']
    #allocation4 [shape = 's32[1]{0}', space=sflag, size = 0x4, scoped, tag = 'scoped memory for tpu_custom_call.1']
    #allocation5 [shape = 'u8[32768]{0}', space=vmem, size = 0x8000, scoped, tag = 'input window, operand 1, single buffered']
    #allocation6 [shape = 's32[1]{0}', space=sflag, size = 0x4, scoped, tag = 'scoped memory for tpu_custom_call.1']
    #allocation7 [shape = 'u8[4096]{0}', space=vmem, size = 0x1000, scoped, tag = 'output window, operand 0, single buffered']
    %7 = vsyncpa [#allocation3], 0
    %8 = vsyncpa [#allocation6], 0
    %9 = vsyncpa [#allocation4], 0
    // Predicated region
    $region2: #{tpu_custom_call.1} parent=1 // pred_check
      _
    $region3: #{tpu_custom_call.1} parent=1 // pred_check_branch
      %11 = sbr.rel (0) target = $region5
    $region4: #{tpu_custom_call.1} parent=1 // pred_region
      %s13 = ssub.s32 128, 128
      %14 = vsyncadd [#allocation3], %s13
      %s16 = sshll.u32 [#allocation2], 4
      %s17 = int_to_ptr.vmem [resolvable:$true] %s16
      %19 = dma.hbm_to_vmem [thread:$0]  %s0, 128, %s17, [#allocation3]
    $region5: #{tpu_custom_call.1} parent=1 // pred_fallthru
      _
    // Predicated region
    $region6: #{tpu_custom_call.1} parent=1 // pred_check
      _
    $region7: #{tpu_custom_call.1} parent=1 // pred_check_branch
      %21 = sbr.rel (0) target = $region9
    $region8: #{tpu_custom_call.1} parent=1 // pred_region
      %s23 = ssub.s32 1024, 1024
      %24 = vsyncadd [#allocation6], %s23
      %s25 = sshll.u32 [#allocation5], 4
      %s26 = int_to_ptr.vmem [resolvable:$true] %s25
      %31 = dma.hbm_to_vmem [thread:$0]  %s1, 1024, %s26, [#allocation6], 128, 128, 8
    $region9: #{tpu_custom_call.1} parent=1 // pred_fallthru
      _
    // Predicated region
    $region10: #{tpu_custom_call.1} parent=1 // pred_check
      _
    $region11: #{tpu_custom_call.1} parent=1 // pred_check_branch
      %33 = sbr.rel (0) target = $region13
    $region12: #{tpu_custom_call.1} parent=1 // pred_region
      %34 = dma.done [#allocation3], 128
    $region13: #{tpu_custom_call.1} parent=1 // pred_fallthru
      _
    // Predicated region
    $region14: #{tpu_custom_call.1} parent=1 // pred_check
      _
    $region15: #{tpu_custom_call.1} parent=1 // pred_check_branch
      %36 = sbr.rel (0) target = $region17
    $region16: #{tpu_custom_call.1} parent=1 // pred_region
      %37 = dma.done [#allocation6], 1024
    $region17: #{tpu_custom_call.1} parent=1 // pred_fallthru
      _
    %v38 = vld [vmem:[#allocation2] sm:$0xff]
    %s39 = smul.u32 0, 8
    %s40 = scalar_lea.vmem [#allocation5], %s39
    %v41 = vld [vmem:[%s40] sm:$0xff]
    %v42 = vld [vmem:[%s40 + $0x8] sm:$0xff]
    %v43 = vld [vmem:[%s40 + $0x10] sm:$0xff]
    %v44 = vld [vmem:[%s40 + $0x18] sm:$0xff]
    %v45 = vld [vmem:[%s40 + $0x20] sm:$0xff]
    %v46 = vld [vmem:[%s40 + $0x28] sm:$0xff]
    %v47 = vld [vmem:[%s40 + $0x30] sm:$0xff]
    %v48 = vld [vmem:[%s40 + $0x38] sm:$0xff]
    %v50 = vcombine.high %v38, %v38
    %v52 = vunpack.c.l.s4 1966171168
    %v53 = vunpack.c.0.s8 %v52
    %v54 = vlaneseq
    %v55 = vshrl.u32 %v54, 7
    %v56 = vsub.s32 %v53, %v55
    %v57 = vrot.slane %v38, %v56
    %v59 = vunpack.c.l.s4 1966171168
    %v60 = vunpack.c.0.s8 %v59
    %v61 = vlaneseq
    %v62 = vshrl.u32 %v61, 7
    %v63 = vsub.s32 %v60, %v62
    %v64 = vrot.slane %v50, %v63
    %v65 = vcombine.high %v57, %v57
    %v66 = vcombine.high %v64, %v64
    %v68 = vunpack.c.l.s4 1966171168
    %v69 = vunpack.c.0.s8 %v68
    %v70 = vlaneseq
    %v71 = vshrl.u32 %v70, 7
    %v72 = vsub.s32 %v69, %v71
    %v73 = vrot.slane %v57, %v72
    %v75 = vunpack.c.l.s4 1966171168
    %v76 = vunpack.c.0.s8 %v75
    %v77 = vlaneseq
    %v78 = vshrl.u32 %v77, 7
    %v79 = vsub.s32 %v76, %v78
    %v80 = vrot.slane %v64, %v79
    %v82 = vunpack.c.l.s4 1966171168
    %v83 = vunpack.c.0.s8 %v82
    %v84 = vlaneseq
    %v85 = vshrl.u32 %v84, 7
    %v86 = vsub.s32 %v83, %v85
    %v87 = vrot.slane %v65, %v86
    %v89 = vunpack.c.l.s4 1966171168
    %v90 = vunpack.c.0.s8 %v89
    %v91 = vlaneseq
    %v92 = vshrl.u32 %v91, 7
    %v93 = vsub.s32 %v90, %v92
    %v94 = vrot.slane %v66, %v93
    %v95 = vcombine.high %v73, %v73
    %v96 = vcombine.high %v80, %v80
    %v97 = vcombine.high %v87, %v87
    %v98 = vcombine.high %v94, %v94
    %v99 = vlaneseq
    %v100 = vshrl.u32 %v99, 7
    %v101 = vsub.s32 0, %v100
    %v102 = vrot.slane %v73, %v101
    %v103 = vlaneseq
    %v104 = vshrl.u32 %v103, 7
    %v105 = vsub.s32 0, %v104
    %v106 = vrot.slane %v87, %v105
    %v107 = vlaneseq
    %v108 = vshrl.u32 %v107, 7
    %v109 = vsub.s32 0, %v108
    %v110 = vrot.slane %v95, %v109
    %v111 = vlaneseq
    %v112 = vshrl.u32 %v111, 7
    %v113 = vsub.s32 0, %v112
    %v114 = vrot.slane %v97, %v113
    %v115 = vlaneseq
    %v116 = vshrl.u32 %v115, 7
    %v117 = vsub.s32 0, %v116
    %v118 = vrot.slane %v80, %v117
    %v119 = vlaneseq
    %v120 = vshrl.u32 %v119, 7
    %v121 = vsub.s32 0, %v120
    %v122 = vrot.slane %v94, %v121
    %v123 = vlaneseq
    %v124 = vshrl.u32 %v123, 7
    %v125 = vsub.s32 0, %v124
    %v126 = vrot.slane %v96, %v125
    %v127 = vlaneseq
    %v128 = vshrl.u32 %v127, 7
    %v129 = vsub.s32 0, %v128
    %v130 = vrot.slane %v98, %v129
    %v139 = vmul.f32 %v41, %v102
    %v140 = vmul.f32 %v42, %v106
    %v141 = vmul.f32 %v43, %v110
    %v142 = vmul.f32 %v44, %v114
    %v143 = vmul.f32 %v45, %v118
    %v144 = vmul.f32 %v46, %v122
    %v145 = vmul.f32 %v47, %v126
    %v146 = vmul.f32 %v48, %v130
    %vm147 = vcmask 261120
    %v148 = vsel %vm147, %v139, 0.0
    %149 = vadd.xlane.f32.xlu0 %v148
    %v150 = vpop.xlane.xlu0 %149
    %v151 = vsel %vm147, %v140, 0.0
    %152 = vadd.xlane.f32.xlu0 %v151
    %v153 = vpop.xlane.xlu0 %152
    %v154 = vsel %vm147, %v141, 0.0
    %155 = vadd.xlane.f32.xlu0 %v154
    %v156 = vpop.xlane.xlu0 %155
    %v157 = vsel %vm147, %v142, 0.0
    %158 = vadd.xlane.f32.xlu0 %v157
    %v159 = vpop.xlane.xlu0 %158
    %v160 = vsel %vm147, %v143, 0.0
    %161 = vadd.xlane.f32.xlu0 %v160
    %v162 = vpop.xlane.xlu0 %161
    %v163 = vsel %vm147, %v144, 0.0
    %164 = vadd.xlane.f32.xlu0 %v163
    %v165 = vpop.xlane.xlu0 %164
    %v166 = vsel %vm147, %v145, 0.0
    %167 = vadd.xlane.f32.xlu0 %v166
    %v168 = vpop.xlane.xlu0 %167
    %v169 = vsel %vm147, %v146, 0.0
    %170 = vadd.xlane.f32.xlu0 %v169
    %v171 = vpop.xlane.xlu0 %170
    %v180 = vlaneseq
    %v181 = vand.u32 %v180, 127
    %v182 = vlaneseq
    %v183 = vshrl.u32 %v182, 7
    %v184 = vsub.s32 %v181, %v183
    %v185 = vrot.slane %v150, %v184
    %v186 = vlaneseq
    %v187 = vshrl.u32 %v186, 7
    %v188 = vsub.s32 %v181, %v187
    %v189 = vrot.slane %v153, %v188
    %v190 = vlaneseq
    %v191 = vshrl.u32 %v190, 7
    %v192 = vsub.s32 %v181, %v191
    %v193 = vrot.slane %v156, %v192
    %v194 = vlaneseq
    %v195 = vshrl.u32 %v194, 7
    %v196 = vsub.s32 %v181, %v195
    %v197 = vrot.slane %v159, %v196
    %v198 = vlaneseq
    %v199 = vshrl.u32 %v198, 7
    %v200 = vsub.s32 %v181, %v199
    %v201 = vrot.slane %v162, %v200
    %v202 = vlaneseq
    %v203 = vshrl.u32 %v202, 7
    %v204 = vsub.s32 %v181, %v203
    %v205 = vrot.slane %v165, %v204
    %v206 = vlaneseq
    %v207 = vshrl.u32 %v206, 7
    %v208 = vsub.s32 %v181, %v207
    %v209 = vrot.slane %v168, %v208
    %v210 = vlaneseq
    %v211 = vshrl.u32 %v210, 7
    %v212 = vsub.s32 %v181, %v211
    %v213 = vrot.slane %v171, %v212
    %vm214 = vcmask 1041409
    %v215 = vsel %vm214, %v189, %v185
    %vm216 = vcmask 1042434
    %v217 = vsel %vm216, %v193, %v215
    %vm218 = vcmask 1043459
    %v219 = vsel %vm218, %v197, %v217
    %vm220 = vcmask 1044484
    %v221 = vsel %vm220, %v201, %v219
    %vm222 = vcmask 1045509
    %v223 = vsel %vm222, %v205, %v221
    %vm224 = vcmask 1046534
    %v225 = vsel %vm224, %v209, %v223
    %vm226 = vcmask 1047559
    %v227 = vsel %vm226, %v213, %v225
    %vm229 = vcmask 64512
    %v230 = vsel %vm229, %v227, -inf
    %231 = vmax.xlane.f32.xlu0 %v230
    %v232 = vpop.xlane.xlu0 %231
    %v234 = vlaneseq
    %v235 = vshrl.u32 %v234, 7
    %v236 = vsub.s32 0, %v235
    %v237 = vrot.slane %v232, %v236
    %v238 = vlaneseq
    %v239 = vshrl.u32 %v238, 7
    %v240 = vsub.s32 1, %v239
    %v241 = vrot.slane %v232, %v240
    %v242 = vlaneseq
    %v243 = vshrl.u32 %v242, 7
    %v244 = vsub.s32 2, %v243
    %v245 = vrot.slane %v232, %v244
    %v246 = vlaneseq
    %v247 = vshrl.u32 %v246, 7
    %v248 = vsub.s32 3, %v247
    %v249 = vrot.slane %v232, %v248
    %v250 = vlaneseq
    %v251 = vshrl.u32 %v250, 7
    %v252 = vsub.s32 4, %v251
    %v253 = vrot.slane %v232, %v252
    %v254 = vlaneseq
    %v255 = vshrl.u32 %v254, 7
    %v256 = vsub.s32 5, %v255
    %v257 = vrot.slane %v232, %v256
    %v258 = vlaneseq
    %v259 = vshrl.u32 %v258, 7
    %v260 = vsub.s32 6, %v259
    %v261 = vrot.slane %v232, %v260
    %v262 = vlaneseq
    %v263 = vshrl.u32 %v262, 7
    %v264 = vsub.s32 7, %v263
    %v265 = vrot.slane %v232, %v264
    %v274 = vsub.f32 %v150, %v237
    %v275 = vsub.f32 %v153, %v241
    %v276 = vsub.f32 %v156, %v245
    %v277 = vsub.f32 %v159, %v249
    %v278 = vsub.f32 %v162, %v253
    %v279 = vsub.f32 %v165, %v257
    %v280 = vsub.f32 %v168, %v261
    %v281 = vsub.f32 %v171, %v265
    %v282 = vmul.f32 %v274, 1.442695
    %v283 = vpow.pop %v282
    %v284 = vmul.f32 %v275, 1.442695
    %v285 = vpow.pop %v284
    %v286 = vmul.f32 %v276, 1.442695
    %v287 = vpow.pop %v286
    %v288 = vmul.f32 %v277, 1.442695
    %v289 = vpow.pop %v288
    %v290 = vmul.f32 %v278, 1.442695
    %v291 = vpow.pop %v290
    %v292 = vmul.f32 %v279, 1.442695
    %v293 = vpow.pop %v292
    %v294 = vmul.f32 %v280, 1.442695
    %v295 = vpow.pop %v294
    %v296 = vmul.f32 %v281, 1.442695
    %v297 = vpow.pop %v296
    %306 = vset.pattern.permute.xlu0 0
    %307 = vperm.xlu0 %306, %v283
    %v308 = vpop.permute.xlu0 %307
    %309 = vset.pattern.permute.xlu0 0
    %310 = vperm.xlu0 %309, %v285
    %v311 = vpop.permute.xlu0 %310
    %312 = vset.pattern.permute.xlu0 0
    %313 = vperm.xlu0 %312, %v287
    %v314 = vpop.permute.xlu0 %313
    %315 = vset.pattern.permute.xlu0 0
    %316 = vperm.xlu0 %315, %v289
    %v317 = vpop.permute.xlu0 %316
    %318 = vset.pattern.permute.xlu0 0
    %319 = vperm.xlu0 %318, %v291
    %v320 = vpop.permute.xlu0 %319
    %321 = vset.pattern.permute.xlu0 0
    %322 = vperm.xlu0 %321, %v293
    %v323 = vpop.permute.xlu0 %322
    %324 = vset.pattern.permute.xlu0 0
    %325 = vperm.xlu0 %324, %v295
    %v326 = vpop.permute.xlu0 %325
    %327 = vset.pattern.permute.xlu0 0
    %328 = vperm.xlu0 %327, %v297
    %v329 = vpop.permute.xlu0 %328
    %v330 = vlaneseq
    %v331 = vshrl.u32 %v330, 7
    %v332 = vsub.s32 %v181, %v331
    %v333 = vrot.slane %v308, %v332
    %v334 = vlaneseq
    %v335 = vshrl.u32 %v334, 7
    %v336 = vsub.s32 %v181, %v335
    %v337 = vrot.slane %v311, %v336
    %v338 = vlaneseq
    %v339 = vshrl.u32 %v338, 7
    %v340 = vsub.s32 %v181, %v339
    %v341 = vrot.slane %v314, %v340
    %v342 = vlaneseq
    %v343 = vshrl.u32 %v342, 7
    %v344 = vsub.s32 %v181, %v343
    %v345 = vrot.slane %v317, %v344
    %v346 = vlaneseq
    %v347 = vshrl.u32 %v346, 7
    %v348 = vsub.s32 %v181, %v347
    %v349 = vrot.slane %v320, %v348
    %v350 = vlaneseq
    %v351 = vshrl.u32 %v350, 7
    %v352 = vsub.s32 %v181, %v351
    %v353 = vrot.slane %v323, %v352
    %v354 = vlaneseq
    %v355 = vshrl.u32 %v354, 7
    %v356 = vsub.s32 %v181, %v355
    %v357 = vrot.slane %v326, %v356
    %v358 = vlaneseq
    %v359 = vshrl.u32 %v358, 7
    %v360 = vsub.s32 %v181, %v359
    %v361 = vrot.slane %v329, %v360
    %v362 = vsel %vm214, %v337, %v333
    %v363 = vsel %vm216, %v341, %v362
    %v364 = vsel %vm218, %v345, %v363
    %v365 = vsel %vm220, %v349, %v364
    %v366 = vsel %vm222, %v353, %v365
    %v367 = vsel %vm224, %v357, %v366
    %v368 = vsel %vm226, %v361, %v367
    %v370 = vsel %vm229, %v368, 0.0
    %371 = vadd.xlane.f32.xlu0 %v370
    %v372 = vpop.xlane.xlu0 %371
    %v373 = vrcp.pop %v372
    %v374 = vmul.f32 1.0, %v373
    %v376 = vlaneseq
    %v377 = vshrl.u32 %v376, 7
    %v378 = vsub.s32 0, %v377
    %v379 = vrot.slane %v374, %v378
    %v380 = vlaneseq
    %v381 = vshrl.u32 %v380, 7
    %v382 = vsub.s32 1, %v381
    %v383 = vrot.slane %v374, %v382
    %v384 = vlaneseq
    %v385 = vshrl.u32 %v384, 7
    %v386 = vsub.s32 2, %v385
    %v387 = vrot.slane %v374, %v386
    %v388 = vlaneseq
    %v389 = vshrl.u32 %v388, 7
    %v390 = vsub.s32 3, %v389
    %v391 = vrot.slane %v374, %v390
    %v392 = vlaneseq
    %v393 = vshrl.u32 %v392, 7
    %v394 = vsub.s32 4, %v393
    %v395 = vrot.slane %v374, %v394
    %v396 = vlaneseq
    %v397 = vshrl.u32 %v396, 7
    %v398 = vsub.s32 5, %v397
    %v399 = vrot.slane %v374, %v398
    %v400 = vlaneseq
    %v401 = vshrl.u32 %v400, 7
    %v402 = vsub.s32 6, %v401
    %v403 = vrot.slane %v374, %v402
    %v404 = vlaneseq
    %v405 = vshrl.u32 %v404, 7
    %v406 = vsub.s32 7, %v405
    %v407 = vrot.slane %v374, %v406
    %v416 = vmul.f32 %v283, %v379
    %v417 = vmul.f32 %v285, %v383
    %v418 = vmul.f32 %v287, %v387
    %v419 = vmul.f32 %v289, %v391
    %v420 = vmul.f32 %v291, %v395
    %v421 = vmul.f32 %v293, %v399
    %v422 = vmul.f32 %v295, %v403
    %v423 = vmul.f32 %v297, %v407
    %425 = vset.pattern.permute.xlu0 0
    %426 = vperm.xlu0 %425, %v416
    %v427 = vpop.permute.xlu0 %426
    %430 = vset.pattern.permute.xlu0 0
    %431 = vperm.xlu0 %430, %v417
    %v432 = vpop.permute.xlu0 %431
    %435 = vset.pattern.permute.xlu0 0
    %436 = vperm.xlu0 %435, %v418
    %v437 = vpop.permute.xlu0 %436
    %440 = vset.pattern.permute.xlu0 0
    %441 = vperm.xlu0 %440, %v419
    %v442 = vpop.permute.xlu0 %441
    %445 = vset.pattern.permute.xlu0 0
    %446 = vperm.xlu0 %445, %v420
    %v447 = vpop.permute.xlu0 %446
    %450 = vset.pattern.permute.xlu0 0
    %451 = vperm.xlu0 %450, %v421
    %v452 = vpop.permute.xlu0 %451
    %455 = vset.pattern.permute.xlu0 0
    %456 = vperm.xlu0 %455, %v422
    %v457 = vpop.permute.xlu0 %456
    %460 = vset.pattern.permute.xlu0 0
    %461 = vperm.xlu0 %460, %v423
    %v462 = vpop.permute.xlu0 %461
    %v464 = vmul.f32 %v41, %v427
    %v465 = vmul.f32 %v42, %v432
    %v466 = vmul.f32 %v43, %v437
    %v467 = vmul.f32 %v44, %v442
    %v468 = vmul.f32 %v45, %v447
    %v469 = vmul.f32 %v46, %v452
    %v470 = vmul.f32 %v47, %v457
    %v471 = vmul.f32 %v48, %v462
    %v472 = vsel %vm147, %v464, 0.0
    %v473 = vrot.slane %v472, 4
    %v474 = vadd.f32 %v472, %v473
    %v475 = vrot.slane %v474, 2
    %v476 = vadd.f32 %v474, %v475
    %v477 = vrot.slane %v476, 1
    %v478 = vadd.f32 %v476, %v477
    %v479 = vsel %vm147, %v465, 0.0
    %v480 = vrot.slane %v479, 4
    %v481 = vadd.f32 %v479, %v480
    %v482 = vrot.slane %v481, 2
    %v483 = vadd.f32 %v481, %v482
    %v484 = vrot.slane %v483, 1
    %v485 = vadd.f32 %v483, %v484
    %v486 = vsel %vm147, %v466, 0.0
    %v487 = vrot.slane %v486, 4
    %v488 = vadd.f32 %v486, %v487
    %v489 = vrot.slane %v488, 2
    %v490 = vadd.f32 %v488, %v489
    %v491 = vrot.slane %v490, 1
    %v492 = vadd.f32 %v490, %v491
    %v493 = vsel %vm147, %v467, 0.0
    %v494 = vrot.slane %v493, 4
    %v495 = vadd.f32 %v493, %v494
    %v496 = vrot.slane %v495, 2
    %v497 = vadd.f32 %v495, %v496
    %v498 = vrot.slane %v497, 1
    %v499 = vadd.f32 %v497, %v498
    %v500 = vsel %vm147, %v468, 0.0
    %v501 = vrot.slane %v500, 4
    %v502 = vadd.f32 %v500, %v501
    %v503 = vrot.slane %v502, 2
    %v504 = vadd.f32 %v502, %v503
    %v505 = vrot.slane %v504, 1
    %v506 = vadd.f32 %v504, %v505
    %v507 = vsel %vm147, %v469, 0.0
    %v508 = vrot.slane %v507, 4
    %v509 = vadd.f32 %v507, %v508
    %v510 = vrot.slane %v509, 2
    %v511 = vadd.f32 %v509, %v510
    %v512 = vrot.slane %v511, 1
    %v513 = vadd.f32 %v511, %v512
    %v514 = vsel %vm147, %v470, 0.0
    %v515 = vrot.slane %v514, 4
    %v516 = vadd.f32 %v514, %v515
    %v517 = vrot.slane %v516, 2
    %v518 = vadd.f32 %v516, %v517
    %v519 = vrot.slane %v518, 1
    %v520 = vadd.f32 %v518, %v519
    %v521 = vsel %vm147, %v471, 0.0
    %v522 = vrot.slane %v521, 4
    %v523 = vadd.f32 %v521, %v522
    %v524 = vrot.slane %v523, 2
    %v525 = vadd.f32 %v523, %v524
    %v526 = vrot.slane %v525, 1
    %v527 = vadd.f32 %v525, %v526
    %v536 = vsel %vm214, %v485, %v478
    %v537 = vsel %vm216, %v492, %v536
    %v538 = vsel %vm218, %v499, %v537
    %v539 = vsel %vm220, %v506, %v538
    %v540 = vsel %vm222, %v513, %v539
    %v541 = vsel %vm224, %v520, %v540
    %v542 = vsel %vm226, %v527, %v541
    %544 = vst.msk [vmem:[#allocation7] sm:$0xff] %vm147, %v542
    // Predicated region
    $region18: #{tpu_custom_call.1} parent=1 // pred_check
      _
    $region19: #{tpu_custom_call.1} parent=1 // pred_check_branch
      %546 = sbr.rel (0) target = $region21
    $region20: #{tpu_custom_call.1} parent=1 // pred_region
      %s548 = ssub.s32 128, 128
      %549 = vsyncadd [#allocation4], %s548
      %s551 = sshll.u32 [#allocation7], 4
      %s552 = int_to_ptr.vmem [resolvable:$true] %s551
      %554 = dma.vmem_to_hbm [thread:$0]  %s552, 128, %s2, [#allocation4]
    $region21: #{tpu_custom_call.1} parent=1 // pred_fallthru
      _
    // Predicated region
    $region22: #{tpu_custom_call.1} parent=1 // pred_check
      _
    $region23: #{tpu_custom_call.1} parent=1 // pred_check_branch
      %556 = sbr.rel (0) target = $region25
    $region24: #{tpu_custom_call.1} parent=1 // pred_region
      %557 = dma.done [#allocation4], 128
    $region25: #{tpu_custom_call.1} parent=1 // pred_fallthru
      _
    %558 = vsyncpa [#allocation3], 1
    %559 = vsyncpa [#allocation6], 1
    %560 = vsyncpa [#allocation4], 1

</llo_original>
